<compile_context>
chip_gen: v5e
topology: v5e:2x2
jax: 0.10.0
libtpu: 0.0.40
codegen_flags: <defaults>
</compile_context>

<pallas_src>
from functools import partial

import jax
import jax.numpy as jnp
from jax.experimental import pallas as pl
from jax.experimental.pallas import tpu as pltpu

HIDDEN = 32
SCALE = 300.0

_LANE = 128
_TM_MAX = 4096          # per-tile activations (32, tm) f32 stay ~0.5 MiB << VMEM
_W23_ROWS = 40          # 32 rows of W2^T + 1 row of (w3*SCALE)^T, padded to mult. of 8


def _choose_tile(n):
    """Pick the lane tile (multiple of 128) for a batch of n points."""
    n_ceil = ((n + _LANE - 1) // _LANE) * _LANE
    if n_ceil <= 1024:                 # small problem: one grid step, zero pipelining
        return n_ceil
    if n_ceil <= 2 * _TM_MAX:          # moderate: exactly 2 tiles (both TCs on v7x)
        half = (n_ceil + 1) // 2
        return ((half + _LANE - 1) // _LANE) * _LANE
    return _TM_MAX                     # large: big tiles amortize step overhead


def pinn_kernel(t_ref, w23_ref, c_ref, o_ref):
    # t_ref: (1, tm) lane-dense batch tile.
    # w23_ref: (40, 32) = [W2^T (32,32); (w3*SCALE)^T row; zero pad]
    # c_ref: (32, 4) columns = [w1, b1, b2, b3*SCALE]
    t_row = t_ref[...]                                            # (1, tm)

    c = c_ref[...]                                                # (32, 4)
    w1c = c[:, 0:1]                                               # (32, 1)
    b1c = c[:, 1:2]
    b2c = c[:, 2:3]
    b3s = c[0:1, 3:4]                                             # (1, 1)

    # Layer 1: Linear(1, 32) -- K=1 is degenerate on the MXU, do it on the VPU.
    h1 = jnp.tanh(w1c * t_row + b1c)                              # (32, tm)

    # Layer 2: Linear(32, 32) on the MXU; batch streams along the lane/N axis.
    w2t = w23_ref[pl.ds(0, HIDDEN), :]                            # (32, 32)
    h2 = jnp.tanh(
        jnp.dot(w2t, h1, preferred_element_type=jnp.float32) + b2c
    )                                                             # (32, tm)

    # Layer 3: Linear(32, 1) with *SCALE folded into w3/b3; lane-dense row out.
    w3s = w23_ref[pl.ds(HIDDEN, 1), :]                            # (1, 32)
    o_ref[...] = (
        jnp.dot(w3s, h2, preferred_element_type=jnp.float32) + b3s
    )                                                             # (1, tm)


@partial(jax.jit, static_argnames=("tm",))
def _pinn_jit(t, params, tm):
    w1, b1, w2, b2, w3, b3 = params            # (in, out) convention
    N = t.shape[0]

    # ---- trace-time packing of the constants (fused into this one jit) ----
    w2t = w2.T.astype(jnp.float32)                                # (32, 32)
    w3s_row = (w3.T * SCALE).astype(jnp.float32)                  # (1, 32)
    w23 = jnp.zeros((_W23_ROWS, HIDDEN), jnp.float32)
    w23 = w23.at[0:HIDDEN, :].set(w2t).at[HIDDEN, :].set(w3s_row[0])

    b3s_val = (b3 * SCALE).astype(jnp.float32)[0, 0]
    consts = jnp.stack(
        [w1[0].astype(jnp.float32),
         b1[0].astype(jnp.float32),
         b2[0].astype(jnp.float32),
         jnp.full((HIDDEN,), b3s_val, jnp.float32)],
        axis=1,
    )                                                             # (32, 4)

    # ---- batch: pad to a multiple of tm, lane-dense row ----
    n_tiles = pl.cdiv(N, tm)
    n_pad = n_tiles * tm
    t_row = jnp.pad(t.reshape(-1).astype(jnp.float32), (0, n_pad - N)).reshape(1, n_pad)

    out_row = pl.pallas_call(
        pinn_kernel,
        out_shape=jax.ShapeDtypeStruct((1, n_pad), jnp.float32),
        grid_spec=pltpu.PrefetchScalarGridSpec(
            num_scalar_prefetch=0,
            grid=(n_tiles,),
            in_specs=[
                pl.BlockSpec((1, tm), lambda i: (0, i)),           # batch tile
                pl.BlockSpec((_W23_ROWS, HIDDEN), lambda i: (0, 0)),  # W2^T | w3*S
                pl.BlockSpec((HIDDEN, 4), lambda i: (0, 0)),       # w1|b1|b2|b3*S
            ],
            out_specs=pl.BlockSpec((1, tm), lambda i: (0, i)),
        ),
        compiler_params=pltpu.CompilerParams(
            dimension_semantics=("parallel",),
        ),
    )(t_row, w23, consts)

    return out_row[0, :N].reshape(N, 1)


def pinn_forward(t, params, *, tm=None):
    """t: (N, 1) float32. Returns (N, 1) float32."""
    if tm is None:
        tm = _choose_tile(t.shape[0])
    return _pinn_jit(t, params, tm)


def make_params(key):
    """Deterministic init mirroring nn.Linear shapes; weights stored as (in, out)."""
    k1, k2, k3, k4, k5, k6 = jax.random.split(key, 6)
    w1 = jax.random.uniform(k1, (1, HIDDEN), jnp.float32, -1.0, 1.0)       # Linear(1, 32)
    b1 = jax.random.uniform(k2, (1, HIDDEN), jnp.float32, -1.0, 1.0)
    w2 = jax.random.uniform(k3, (HIDDEN, HIDDEN), jnp.float32, -0.2, 0.2)  # Linear(32, 32)
    b2 = jax.random.uniform(k4, (1, HIDDEN), jnp.float32, -0.2, 0.2)
    w3 = jax.random.uniform(k5, (HIDDEN, 1), jnp.float32, -0.2, 0.2)       # Linear(32, 1)
    b3 = jax.random.uniform(k6, (1, 1), jnp.float32, -0.2, 0.2)
    return (w1, b1, w2, b2, w3, b3)


def pinn_ref(t, params):
    w1, b1, w2, b2, w3, b3 = params
    h1 = jnp.tanh(t @ w1 + b1)
    h2 = jnp.tanh(h1 @ w2 + b2)
    return (h2 @ w3 + b3) * SCALE


if __name__ == "__main__":
    key = jax.random.PRNGKey(0)
    kp, kt1, kt2 = jax.random.split(key, 3)

    params = make_params(kp)

    # Small batch: single grid step (tm = 128), padded tail sliced off.
    N1 = 64
    t1 = jax.random.uniform(kt1, (N1, 1), jnp.float32, 0.0, 10.0)
    out1 = jax.block_until_ready(pinn_forward(t1, params))
    ref1 = pinn_ref(t1, params)
    assert out1.shape == (N1, 1)
    assert jnp.allclose(out1, ref1, atol=1e-4, rtol=1e-4), "mismatch (small batch)"

    # Moderate batch: exercises the 2-tile 'parallel' grid + padding path.
    N2 = 1500
    t2 = jax.random.uniform(kt2, (N2, 1), jnp.float32, 0.0, 10.0)
    out2 = jax.block_until_ready(pinn_forward(t2, params))
    ref2 = pinn_ref(t2, params)
    assert out2.shape == (N2, 1)
    assert jnp.allclose(out2, ref2, atol=1e-4, rtol=1e-4), "mismatch (moderate batch)"

    print("KERNEL_OK")
</pallas_src>

<mosaic_0001>
module attributes {stable_mosaic.version = 11 : i64} {
  func.func @pinn_kernel(%arg0: i32, %arg1: memref<1x128xf32, #tpu.memory_space<vmem>>, %arg2: memref<40x32xf32, #tpu.memory_space<vmem>>, %arg3: memref<32x4xf32, #tpu.memory_space<vmem>>, %arg4: memref<1x128xf32, #tpu.memory_space<vmem>>) attributes {dimension_semantics = [#tpu.dimension_semantics<parallel>], iteration_bounds = array<i64: 1>, scalar_prefetch = 0 : i64, scratch_operands = 0 : i64, tpu.core_type = #tpu.core_type<tc>, window_params = [{transform_indices = @transform_0, window_bounds = array<i64: 1, 128>}, {pipeline_mode = #tpu.pipeline_mode<synchronous>, transform_indices = @transform_1, window_bounds = array<i64: 40, 32>}, {pipeline_mode = #tpu.pipeline_mode<synchronous>, transform_indices = @transform_2, window_bounds = array<i64: 32, 4>}, {transform_indices = @transform_3, window_bounds = array<i64: 1, 128>}]} {
    %c0 = arith.constant 0 : index
    %c0_0 = arith.constant 0 : index
    %0 = vector.load %arg1[%c0, %c0_0] : memref<1x128xf32, #tpu.memory_space<vmem>>, vector<1x128xf32>
    %c0_1 = arith.constant 0 : index
    %c0_2 = arith.constant 0 : index
    %1 = vector.load %arg3[%c0_1, %c0_2] : memref<32x4xf32, #tpu.memory_space<vmem>>, vector<32x4xf32>
    %2 = vector.extract_strided_slice %1 {offsets = [0, 0], sizes = [32, 1], strides = [1, 1]} : vector<32x4xf32> to vector<32x1xf32>
    %3 = vector.extract_strided_slice %1 {offsets = [0, 1], sizes = [32, 1], strides = [1, 1]} : vector<32x4xf32> to vector<32x1xf32>
    %4 = vector.extract_strided_slice %1 {offsets = [0, 2], sizes = [32, 1], strides = [1, 1]} : vector<32x4xf32> to vector<32x1xf32>
    %5 = vector.extract_strided_slice %1 {offsets = [0, 3], sizes = [1, 1], strides = [1, 1]} : vector<32x4xf32> to vector<1x1xf32>
    %6 = vector.broadcast %2 : vector<32x1xf32> to vector<32x128xf32>
    %7 = vector.broadcast %0 : vector<1x128xf32> to vector<32x128xf32>
    %8 = arith.mulf %6, %7 : vector<32x128xf32>
    %9 = vector.broadcast %3 : vector<32x1xf32> to vector<32x128xf32>
    %10 = arith.addf %8, %9 : vector<32x128xf32>
    %11 = math.tanh %10 : vector<32x128xf32>
    %c0_3 = arith.constant 0 : index
    %c0_4 = arith.constant 0 : index
    %12 = vector.load %arg2[%c0_3, %c0_4] : memref<40x32xf32, #tpu.memory_space<vmem>>, vector<32x32xf32>
    %cst = arith.constant dense<0.000000e+00> : vector<32x128xf32>
    %13 = tpu.matmul %12, %11, %cst {dimension_numbers = #tpu.dot_dimension_numbers<[1], [0], [0], [1], [0, 0, 1, 1], [], []>} : vector<32x32xf32>, vector<32x128xf32>, vector<32x128xf32> -> vector<32x128xf32>
    %14 = vector.broadcast %4 : vector<32x1xf32> to vector<32x128xf32>
    %15 = arith.addf %13, %14 : vector<32x128xf32>
    %16 = math.tanh %15 : vector<32x128xf32>
    %c32 = arith.constant 32 : index
    %c0_5 = arith.constant 0 : index
    %17 = vector.load %arg2[%c32, %c0_5] : memref<40x32xf32, #tpu.memory_space<vmem>>, vector<1x32xf32>
    %cst_6 = arith.constant dense<0.000000e+00> : vector<1x128xf32>
    %18 = tpu.matmul %17, %16, %cst_6 {dimension_numbers = #tpu.dot_dimension_numbers<[1], [0], [0], [1], [0, 0, 1, 1], [], []>} : vector<1x32xf32>, vector<32x128xf32>, vector<1x128xf32> -> vector<1x128xf32>
    %19 = vector.broadcast %5 : vector<1x1xf32> to vector<1x128xf32>
    %20 = arith.addf %18, %19 : vector<1x128xf32>
    %c0_7 = arith.constant 0 : index
    %c0_8 = arith.constant 0 : index
    %21 = vector.load %arg4[%c0_7, %c0_8] : memref<1x128xf32, #tpu.memory_space<vmem>>, vector<1x128xf32>
    tpu.vector_store %arg4[%c0_7, %c0_8], %20 {strides = array<i32>} : memref<1x128xf32, #tpu.memory_space<vmem>>, vector<1x128xf32>,
    return
  }
  func.func @transform_0(%arg0: i32) -> (i32, i32) {
    %c0_i32 = arith.constant 0 : i32
    %c0_i32_0 = arith.constant 0 : i32
    return %c0_i32, %arg0 : i32, i32
  }
  func.func @transform_1(%arg0: i32) -> (i32, i32) {
    %c0_i32 = arith.constant 0 : i32
    %c0_i32_0 = arith.constant 0 : i32
    %c0_i32_1 = arith.constant 0 : i32
    return %c0_i32, %c0_i32_0 : i32, i32
  }
  func.func @transform_2(%arg0: i32) -> (i32, i32) {
    %c0_i32 = arith.constant 0 : i32
    %c0_i32_0 = arith.constant 0 : i32
    %c0_i32_1 = arith.constant 0 : i32
    return %c0_i32, %c0_i32_0 : i32, i32
  }
  func.func @transform_3(%arg0: i32) -> (i32, i32) {
    %c0_i32 = arith.constant 0 : i32
    %c0_i32_0 = arith.constant 0 : i32
    return %c0_i32, %arg0 : i32, i32
  }
}

</mosaic_0001>

<llo_original>
// kernel: _pinn_jit.1
$region0: #{_pinn_jit.1}
  #allocation0 [shape = 'u32[]', space=smem, size = 0x4, offset = 0x4, fixed_abs, tag = 'smem constant byte address 0x4 - core index']
  #allocation1 [shape = 'u32[72,128]{1,0:T(1,128)}', space=vmem, size = 0x9000, scoped, tag = 'internal scratch']
  %s0 = inlined_call_operand.vmem [shape: f32[1,128], index: 0, kind: input, shape index: {}]
  %s1 = inlined_call_operand.vmem [shape: f32[40,32], index: 1, kind: input, shape index: {}]
  %s2 = inlined_call_operand.vmem [shape: f32[32,4], index: 2, kind: input, shape index: {}]
  %s3 = inlined_call_operand.vmem [shape: f32[1,128], index: 3, kind: output, shape index: {}]
  %s4 = sld [smem:[#allocation0]]
  $region22: #{_pinn_jit.1} parent=0
    _
  %s6 = ssub.s32 1, %s4
  %s7 = scalar_select 0, %s6, %s4
  // Predicated region
  $region2: #{_pinn_jit.1} parent=0 // pred_check
    _
  $region3: #{_pinn_jit.1} parent=0 // pred_check_branch
    %9 = sbr.rel (0) target = $region5
  $region4: #{_pinn_jit.1} parent=0 // pred_region
    _
  $region5: #{_pinn_jit.1} parent=0 // pred_fallthru
    _
  // Predicated region
  $region6: #{_pinn_jit.1} parent=0 // pred_check
    _
  $region7: #{_pinn_jit.1} parent=0 // pred_check_branch
    %11 = sbr.rel (0) target = $region9
  $region8: #{_pinn_jit.1} parent=0 // pred_region
    _
  $region9: #{_pinn_jit.1} parent=0 // pred_fallthru
    _
  // Predicated region
  $region10: #{_pinn_jit.1} parent=0 // pred_check
    _
  $region11: #{_pinn_jit.1} parent=0 // pred_check_branch
    %13 = sbr.rel (0) target = $region13
  $region12: #{_pinn_jit.1} parent=0 // pred_region
    _
  $region13: #{_pinn_jit.1} parent=0 // pred_fallthru
    _
  %v14 = vld [vmem:[%s0] sm:$0x1]
  %v15 = vld [vmem:[%s2] sm:$0xff]
  %v16 = vld [vmem:[%s2 + $0x8] sm:$0xff]
  %v17 = vld [vmem:[%s2 + $0x10] sm:$0xff]
  %v18 = vld [vmem:[%s2 + $0x18] sm:$0xff]
  %20 = vset.pattern.permute.xlu0 0
  %21 = vperm.xlu0 %20, %v15
  %v22 = vpop.permute.xlu0 %21
  %25 = vset.pattern.permute.xlu0 0
  %26 = vperm.xlu0 %25, %v16
  %v27 = vpop.permute.xlu0 %26
  %30 = vset.pattern.permute.xlu0 0
  %31 = vperm.xlu0 %30, %v17
  %v32 = vpop.permute.xlu0 %31
  %35 = vset.pattern.permute.xlu0 0
  %36 = vperm.xlu0 %35, %v18
  %v37 = vpop.permute.xlu0 %36
  %v40 = vperm.slane %v14, 0
  %v42 = vmul.f32 %v22, %v40
  %v43 = vmul.f32 %v27, %v40
  %v44 = vmul.f32 %v32, %v40
  %v45 = vmul.f32 %v37, %v40
  %46 = vset.pattern.permute.xlu0 1
  %47 = vperm.xlu0 %46, %v15
  %v48 = vpop.permute.xlu0 %47
  %50 = vset.pattern.permute.xlu0 1
  %51 = vperm.xlu0 %50, %v16
  %v52 = vpop.permute.xlu0 %51
  %54 = vset.pattern.permute.xlu0 1
  %55 = vperm.xlu0 %54, %v17
  %v56 = vpop.permute.xlu0 %55
  %58 = vset.pattern.permute.xlu0 1
  %59 = vperm.xlu0 %58, %v18
  %v60 = vpop.permute.xlu0 %59
  %v62 = vadd.f32 %v42, %v48
  %v63 = vadd.f32 %v43, %v52
  %v64 = vadd.f32 %v44, %v56
  %v65 = vadd.f32 %v45, %v60
  %v66 = vtanh.pop %v62
  %v67 = vtanh.pop %v63
  %v68 = vtanh.pop %v64
  %v69 = vtanh.pop %v65
  %v70 = vld [vmem:[%s1] sm:$0xff]
  %v71 = vld [vmem:[%s1 + $0x8] sm:$0xff]
  %v72 = vld [vmem:[%s1 + $0x10] sm:$0xff]
  %v73 = vld [vmem:[%s1 + $0x18] sm:$0xff]
  %74 = vset.pattern.permute.xlu0 2
  %75 = vperm.xlu0 %74, %v15
  %v76 = vpop.permute.xlu0 %75
  %78 = vset.pattern.permute.xlu0 2
  %79 = vperm.xlu0 %78, %v16
  %v80 = vpop.permute.xlu0 %79
  %82 = vset.pattern.permute.xlu0 2
  %83 = vperm.xlu0 %82, %v17
  %v84 = vpop.permute.xlu0 %83
  %86 = vset.pattern.permute.xlu0 2
  %87 = vperm.xlu0 %86, %v18
  %v88 = vpop.permute.xlu0 %87
  %vm90 = vcmask 261120
  %v92 = vsel %vm90, %v70, 0
  %v95 = vsel %vm90, %v71, 0
  %v98 = vsel %vm90, %v72, 0
  %v101 = vsel %vm90, %v73, 0
  %103 = vmatpush.msra.mxu0 0.0
  %104 = vmatpush.msra.mxu0 0.0
  %105 = vmatpush.msra.mxu0 0.0
  %106 = vmatpush.msra.mxu0 0.0
  %107 = vmatpush.msra.mxu0 0.0
  %108 = vmatpush.msra.mxu0 0.0
  %109 = vmatpush.msra.mxu0 0.0
  %110 = vmatpush.msra.mxu0 0.0
  %111 = vmatpush.msra.mxu0 0.0
  %112 = vmatpush.msra.mxu0 0.0
  %113 = vmatpush.msra.mxu0 0.0
  %114 = vmatpush.msra.mxu0 0.0
  %115 = vmatpush.msra.mxu0 %v69
  %116 = vmatpush.msra.mxu0 %v68
  %117 = vmatpush.msra.mxu0 %v67
  %118 = vmatpush.msra.mxu0 %v66
  %119 = vmatmul.f32.gmra.mxu0 %v92
  %v120 = vpop.f32.mrf.mxu0
  %v121 = vadd.f32 %v76, %v120
  %122 = vmatmul.f32.gmra.mxu0 %v95
  %v123 = vpop.f32.mrf.mxu0
  %v124 = vadd.f32 %v80, %v123
  %125 = vmatmul.f32.gmra.mxu0 %v98
  %v126 = vpop.f32.mrf.mxu0
  %v127 = vadd.f32 %v84, %v126
  %128 = vmatmul.f32.gmra.mxu0 %v101
  %v129 = vpop.f32.mrf.mxu0
  %v130 = vadd.f32 %v88, %v129
  %131 = vdwg.mxu0
  %v132 = vtanh.pop %v121
  %v133 = vtanh.pop %v124
  %v134 = vtanh.pop %v127
  %v135 = vtanh.pop %v130
  %v136 = vld [vmem:[%s1 + $0x20] sm:$0x1]
  %137 = vset.pattern.permute.xlu0 3
  %138 = vperm.xlu0 %137, %v15
  %v139 = vpop.permute.xlu0 %138
  %v142 = vsel %vm90, %v136, 0
  %144 = vmatpush.msra.mxu0 0.0
  %145 = vmatpush.msra.mxu0 0.0
  %146 = vmatpush.msra.mxu0 0.0
  %147 = vmatpush.msra.mxu0 0.0
  %148 = vmatpush.msra.mxu0 0.0
  %149 = vmatpush.msra.mxu0 0.0
  %150 = vmatpush.msra.mxu0 0.0
  %151 = vmatpush.msra.mxu0 0.0
  %152 = vmatpush.msra.mxu0 0.0
  %153 = vmatpush.msra.mxu0 0.0
  %154 = vmatpush.msra.mxu0 0.0
  %155 = vmatpush.msra.mxu0 0.0
  %156 = vmatpush.msra.mxu0 %v135
  %157 = vmatpush.msra.mxu0 %v134
  %158 = vmatpush.msra.mxu0 %v133
  %159 = vmatpush.msra.mxu0 %v132
  %160 = vmatmul.f32.gmra.mxu0 %v142
  %v161 = vpop.f32.mrf.mxu0
  %v162 = vadd.f32 %v139, %v161
  %163 = vdwg.mxu0
  %164 = vst [vmem:[%s3] sm:$0x1] %v162
  // Predicated region
  $region14: #{_pinn_jit.1} parent=0 // pred_check
    _
  $region15: #{_pinn_jit.1} parent=0 // pred_check_branch
    %166 = sbr.rel (0) target = $region17
  $region16: #{_pinn_jit.1} parent=0 // pred_region
    _
  $region17: #{_pinn_jit.1} parent=0 // pred_fallthru
    _
  // Predicated region
  $region18: #{_pinn_jit.1} parent=0 // pred_check
    _
  $region19: #{_pinn_jit.1} parent=0 // pred_check_branch
    %168 = sbr.rel (0) target = $region21
  $region20: #{_pinn_jit.1} parent=0 // pred_region
    _
  $region21: #{_pinn_jit.1} parent=0 // pred_fallthru
    _

</llo_original>
